<compile_context>
chip_gen: v7x
topology: tpu7x:2x2x1
jax: 0.10.0
libtpu: 0.0.40
codegen_flags: <defaults>
</compile_context>

<pallas_src>
import jax
import jax.numpy as jnp
from jax import lax
from jax.experimental import pallas as pl
from jax.experimental.pallas import tpu as pltpu


def _round_up(x, m):
    return ((x + m - 1) // m) * m


def rnn_recurrence_kernel(emb_ref, w_ih_ref, w_hh_ref, b_ref, h_ref, xp_ref):
    """One time-chunk of the RNN recurrence.

    emb_ref : (chunk_T*B, E)  embedded tokens for this chunk (time-major rows)
    w_ih_ref: (E, H)          input->hidden weight (transposed PyTorch layout)
    w_hh_ref: (H, H)          hidden->hidden weight (transposed)
    b_ref   : (1, H)          b_ih + b_hh (f32)
    h_ref   : (B, H) OUT      hidden state; resident across the T grid (f32)
    xp_ref  : (chunk_T*B, H)  f32 scratch for the hoisted input projection
    """
    TB, _ = emb_ref.shape
    B, H = h_ref.shape
    chunk_t = TB // B

    @pl.when(pl.program_id(0) == 0)
    def _init():
        h_ref[...] = jnp.zeros_like(h_ref)

    # Hoisted input projection: ONE big MXU matmul for the whole chunk, with the
    # bias broadcast folded in once (not once per time step).
    xp = jnp.dot(emb_ref[...], w_ih_ref[...], preferred_element_type=jnp.float32)
    xp_ref[...] = xp + jnp.broadcast_to(b_ref[...], (TB, H))

    w_hh = w_hh_ref[...]  # load once, reuse every step

    def step(t, h):
        row = pl.multiple_of(t * B, B)
        x_t = xp_ref[pl.ds(row, B), :]                       # (B, H) f32
        pre = x_t + jnp.dot(h.astype(w_hh.dtype), w_hh,
                            preferred_element_type=jnp.float32)
        return jnp.tanh(pre)                                 # h / tanh stay f32

    h_ref[...] = lax.fori_loop(0, chunk_t, step, h_ref[...],
                               unroll=min(chunk_t, 8))


def rnn_head_kernel(h_ref, w_fc_ref, b_fc_ref, out_ref):
    """logits tile = h_final @ W_fc[:, v_tile] + b_fc[v_tile]."""
    out_ref[...] = (
        jnp.dot(h_ref[...].astype(w_fc_ref.dtype), w_fc_ref[...],
                preferred_element_type=jnp.float32)
        + b_fc_ref[...]
    )


def rnn_language_model(tokens, params, *, compute_dtype=jnp.float32,
                       chunk_t=8, tile_v=128):
    """tokens: (B, T) int32.  Returns logits (B, vocab) float32.

    compute_dtype: dtype of the matmul operands (jnp.bfloat16 recommended on
    v6e/v7x); accumulation, hidden state, biases and tanh are always f32.
    """
    emb_table = params["embedding"]   # (V, E)
    w_ih = params["w_ih"]             # (H, E)  -- PyTorch layout
    w_hh = params["w_hh"]             # (H, H)
    b_ih = params["b_ih"]             # (H,)
    b_hh = params["b_hh"]             # (H,)
    w_fc = params["w_fc"]             # (V, H)
    b_fc = params["b_fc"]             # (V,)

    B, T = tokens.shape
    V, E = emb_table.shape
    H = w_ih.shape[0]

    # (8, 128)-aligned padded shapes (lane-dense vreg / MXU tiles).
    B_p = _round_up(max(B, 8), 8)
    E_p = _round_up(E, 128)
    H_p = _round_up(H, 128)
    V_p = _round_up(V, tile_v)

    # Largest chunk size <= chunk_t that divides T (no time padding: extra
    # recurrence steps would change the math).
    chunk = max(1, min(chunk_t, T))
    while T % chunk != 0:
        chunk -= 1
    num_chunks = T // chunk

    # Zero-padding weights/biases keeps the math exact: padded E/H/V rows and
    # columns contribute nothing, padded batch rows are sliced off at the end.
    emb_p = jnp.pad(emb_table, ((0, 0), (0, E_p - E)))
    w_ih_p = jnp.pad(w_ih.T, ((0, E_p - E), (0, H_p - H))).astype(compute_dtype)
    w_hh_p = jnp.pad(w_hh.T, ((0, H_p - H), (0, H_p - H))).astype(compute_dtype)
    b_p = jnp.pad(b_ih + b_hh, (0, H_p - H)).astype(jnp.float32)[None, :]
    w_fc_p = jnp.pad(w_fc.T, ((0, H_p - H), (0, V_p - V))).astype(compute_dtype)
    b_fc_p = jnp.pad(b_fc, (0, V_p - V)).astype(jnp.float32)[None, :]

    # Embedding gather stays in plain JAX (cheap glue). Transposing the tiny
    # token matrix makes the gather emit the activation time-major directly --
    # no transpose pass over the big (B, T, E) activation.
    # TODO(synk): optionally move the gather in-kernel via
    # PrefetchScalarGridSpec(num_scalar_prefetch=1) + pl.Element row gather.
    x_emb = jnp.take(emb_p, tokens.T, axis=0)                # (T, B, E_p)
    x_emb = jnp.pad(x_emb, ((0, 0), (0, B_p - B), (0, 0)))   # (T, B_p, E_p)
    x_emb = x_emb.reshape(T * B_p, E_p).astype(compute_dtype)

    # --- Phase 1: recurrence over T (streamed in chunks, "arbitrary" axis). ---
    h_final = pl.pallas_call(
        rnn_recurrence_kernel,
        out_shape=jax.ShapeDtypeStruct((B_p, H_p), jnp.float32),
        grid_spec=pltpu.PrefetchScalarGridSpec(
            num_scalar_prefetch=0,
            grid=(num_chunks,),
            in_specs=[
                pl.BlockSpec((chunk * B_p, E_p), lambda i: (i, 0)),
                pl.BlockSpec((E_p, H_p), lambda i: (0, 0)),
                pl.BlockSpec((H_p, H_p), lambda i: (0, 0)),
                pl.BlockSpec((1, H_p), lambda i: (0, 0)),
            ],
            out_specs=pl.BlockSpec((B_p, H_p), lambda i: (0, 0)),
            scratch_shapes=[pltpu.VMEM((chunk * B_p, H_p), jnp.float32)],
        ),
        compiler_params=pltpu.CompilerParams(
            dimension_semantics=("arbitrary",)),
    )(x_emb, w_ih_p, w_hh_p, b_p)

    # --- Phase 2: vocab head, tiled over V (lane-dense, "parallel" axis). ---
    num_v_tiles = V_p // tile_v
    logits_p = pl.pallas_call(
        rnn_head_kernel,
        out_shape=jax.ShapeDtypeStruct((B_p, V_p), jnp.float32),
        grid_spec=pltpu.PrefetchScalarGridSpec(
            num_scalar_prefetch=0,
            grid=(num_v_tiles,),
            in_specs=[
                pl.BlockSpec((B_p, H_p), lambda v: (0, 0)),
                pl.BlockSpec((H_p, tile_v), lambda v: (0, v)),
                pl.BlockSpec((1, tile_v), lambda v: (0, v)),
            ],
            out_specs=pl.BlockSpec((B_p, tile_v), lambda v: (0, v)),
        ),
        compiler_params=pltpu.CompilerParams(
            dimension_semantics=("parallel",)),
    )(h_final, w_fc_p, b_fc_p)

    return logits_p[:B, :V]


def reference_forward(tokens, params):
    """Pure-JAX reference mirroring the PyTorch forward."""
    x = jnp.take(params["embedding"], tokens, axis=0)        # (B, T, E)
    B, T, _ = x.shape
    H = params["w_ih"].shape[0]
    h = jnp.zeros((B, H), jnp.float32)
    for t in range(T):
        h = jnp.tanh(x[:, t, :] @ params["w_ih"].T + params["b_ih"]
                     + h @ params["w_hh"].T + params["b_hh"])
    return h @ params["w_fc"].T + params["b_fc"]


def init_params(key, vocab_size, embedding_dim, hidden_dim):
    ks = jax.random.split(key, 7)
    s = 0.1
    return {
        "embedding": s * jax.random.normal(ks[0], (vocab_size, embedding_dim), jnp.float32),
        "w_ih": s * jax.random.normal(ks[1], (hidden_dim, embedding_dim), jnp.float32),
        "w_hh": s * jax.random.normal(ks[2], (hidden_dim, hidden_dim), jnp.float32),
        "b_ih": s * jax.random.normal(ks[3], (hidden_dim,), jnp.float32),
        "b_hh": s * jax.random.normal(ks[4], (hidden_dim,), jnp.float32),
        "w_fc": s * jax.random.normal(ks[5], (vocab_size, hidden_dim), jnp.float32),
        "b_fc": s * jax.random.normal(ks[6], (vocab_size,), jnp.float32),
    }


if __name__ == "__main__":
    vocab_size, embedding_dim, hidden_dim = 16, 32, 32
    batch, seq = 2, 8

    key = jax.random.PRNGKey(0)
    pkey, tkey = jax.random.split(key)
    params = init_params(pkey, vocab_size, embedding_dim, hidden_dim)
    tokens = jax.random.randint(tkey, (batch, seq), 0, vocab_size, dtype=jnp.int32)

    ref = reference_forward(tokens, params)

    # f32 operands: exact match against the pure-JAX reference.
    logits_f32 = jax.block_until_ready(
        rnn_language_model(tokens, params, compute_dtype=jnp.float32))
    assert logits_f32.shape == (batch, vocab_size)
    assert jnp.allclose(logits_f32, ref, atol=1e-5, rtol=1e-5), "f32 mismatch vs reference"

    # bf16 matmul operands (fast path for v6e/v7x MXU): loose numerical check.
    logits_bf16 = jax.block_until_ready(
        rnn_language_model(tokens, params, compute_dtype=jnp.bfloat16))
    assert logits_bf16.shape == (batch, vocab_size)
    assert jnp.allclose(logits_bf16, ref, atol=5e-2, rtol=5e-2), "bf16 mismatch vs reference"

    print("KERNEL_OK")
</pallas_src>

<mosaic_0001>
module attributes {stable_mosaic.version = 11 : i64} {
  func.func @rnn_recurrence_kernel(%arg0: i32, %arg1: memref<64x128xf32, #tpu.memory_space<vmem>>, %arg2: memref<128x128xf32, #tpu.memory_space<vmem>>, %arg3: memref<128x128xf32, #tpu.memory_space<vmem>>, %arg4: memref<1x128xf32, #tpu.memory_space<vmem>>, %arg5: memref<8x128xf32, #tpu.memory_space<vmem>>, %arg6: memref<64x128xf32, #tpu.memory_space<vmem>>) attributes {dimension_semantics = [#tpu.dimension_semantics<arbitrary>], iteration_bounds = array<i64: 1>, scalar_prefetch = 0 : i64, scratch_operands = 1 : i64, tpu.core_type = #tpu.core_type<tc>, window_params = [{transform_indices = @transform_0, window_bounds = array<i64: 64, 128>}, {pipeline_mode = #tpu.pipeline_mode<synchronous>, transform_indices = @transform_1, window_bounds = array<i64: 128, 128>}, {pipeline_mode = #tpu.pipeline_mode<synchronous>, transform_indices = @transform_2, window_bounds = array<i64: 128, 128>}, {pipeline_mode = #tpu.pipeline_mode<synchronous>, transform_indices = @transform_3, window_bounds = array<i64: 1, 128>}, {pipeline_mode = #tpu.pipeline_mode<synchronous>, transform_indices = @transform_4, window_bounds = array<i64: 8, 128>}]} {
    %c0_i32 = arith.constant 0 : i32
    %0 = arith.cmpi eq, %arg0, %c0_i32 : i32
    %1 = arith.extui %0 : i1 to i32
    %c0_i32_0 = arith.constant 0 : i32
    %2 = arith.cmpi ne, %1, %c0_i32_0 : i32
    scf.if %2 {
      %cst_39 = arith.constant 0.000000e+00 : f32
      %70 = vector.broadcast %cst_39 : f32 to vector<8x128xf32>
      %c0_40 = arith.constant 0 : index
      %c0_41 = arith.constant 0 : index
      %71 = vector.load %arg5[%c0_40, %c0_41] : memref<8x128xf32, #tpu.memory_space<vmem>>, vector<8x128xf32>
      tpu.vector_store %arg5[%c0_40, %c0_41], %70 {strides = array<i32>} : memref<8x128xf32, #tpu.memory_space<vmem>>, vector<8x128xf32>,
    } else {
    }
    %c0 = arith.constant 0 : index
    %c0_1 = arith.constant 0 : index
    %3 = vector.load %arg1[%c0, %c0_1] : memref<64x128xf32, #tpu.memory_space<vmem>>, vector<64x128xf32>
    %c0_2 = arith.constant 0 : index
    %c0_3 = arith.constant 0 : index
    %4 = vector.load %arg2[%c0_2, %c0_3] : memref<128x128xf32, #tpu.memory_space<vmem>>, vector<128x128xf32>
    %cst = arith.constant dense<0.000000e+00> : vector<64x128xf32>
    %5 = tpu.matmul %3, %4, %cst {dimension_numbers = #tpu.dot_dimension_numbers<[1], [0], [0], [1], [0, 0, 1, 1], [], []>} : vector<64x128xf32>, vector<128x128xf32>, vector<64x128xf32> -> vector<64x128xf32>
    %c0_4 = arith.constant 0 : index
    %c0_5 = arith.constant 0 : index
    %6 = vector.load %arg4[%c0_4, %c0_5] : memref<1x128xf32, #tpu.memory_space<vmem>>, vector<1x128xf32>
    %7 = vector.shape_cast %6 : vector<1x128xf32> to vector<1x128xf32>
    %8 = vector.broadcast %7 : vector<1x128xf32> to vector<64x128xf32>
    %9 = arith.addf %5, %8 : vector<64x128xf32>
    %c0_6 = arith.constant 0 : index
    %c0_7 = arith.constant 0 : index
    %10 = vector.load %arg6[%c0_6, %c0_7] : memref<64x128xf32, #tpu.memory_space<vmem>>, vector<64x128xf32>
    tpu.vector_store %arg6[%c0_6, %c0_7], %9 {strides = array<i32>} : memref<64x128xf32, #tpu.memory_space<vmem>>, vector<64x128xf32>,
    %c0_8 = arith.constant 0 : index
    %c0_9 = arith.constant 0 : index
    %11 = vector.load %arg3[%c0_8, %c0_9] : memref<128x128xf32, #tpu.memory_space<vmem>>, vector<128x128xf32>
    %c0_10 = arith.constant 0 : index
    %c0_11 = arith.constant 0 : index
    %12 = vector.load %arg5[%c0_10, %c0_11] : memref<8x128xf32, #tpu.memory_space<vmem>>, vector<8x128xf32>
    %c0_i32_12 = arith.constant 0 : i32
    %c8_i32 = arith.constant 8 : i32
    %13 = arith.muli %c0_i32_12, %c8_i32 : i32
    %14 = tpu.assume_multiple %13, 8 : i32
    %15 = arith.index_cast %14 : i32 to index
    %c0_13 = arith.constant 0 : index
    %16 = vector.load %arg6[%15, %c0_13] : memref<64x128xf32, #tpu.memory_space<vmem>>, vector<8x128xf32>
    %cst_14 = arith.constant dense<0.000000e+00> : vector<8x128xf32>
    %17 = tpu.matmul %12, %11, %cst_14 {dimension_numbers = #tpu.dot_dimension_numbers<[1], [0], [0], [1], [0, 0, 1, 1], [], []>} : vector<8x128xf32>, vector<128x128xf32>, vector<8x128xf32> -> vector<8x128xf32>
    %18 = arith.addf %16, %17 : vector<8x128xf32>
    %19 = math.tanh %18 : vector<8x128xf32>
    %c1_i32 = arith.constant 1 : i32
    %c8_i32_15 = arith.constant 8 : i32
    %20 = arith.muli %c1_i32, %c8_i32_15 : i32
    %21 = tpu.assume_multiple %20, 8 : i32
    %22 = arith.index_cast %21 : i32 to index
    %c0_16 = arith.constant 0 : index
    %23 = vector.load %arg6[%22, %c0_16] : memref<64x128xf32, #tpu.memory_space<vmem>>, vector<8x128xf32>
    %cst_17 = arith.constant dense<0.000000e+00> : vector<8x128xf32>
    %24 = tpu.matmul %19, %11, %cst_17 {dimension_numbers = #tpu.dot_dimension_numbers<[1], [0], [0], [1], [0, 0, 1, 1], [], []>} : vector<8x128xf32>, vector<128x128xf32>, vector<8x128xf32> -> vector<8x128xf32>
    %25 = arith.addf %23, %24 : vector<8x128xf32>
    %26 = math.tanh %25 : vector<8x128xf32>
    %c2_i32 = arith.constant 2 : i32
    %c8_i32_18 = arith.constant 8 : i32
    %27 = arith.muli %c2_i32, %c8_i32_18 : i32
    %28 = tpu.assume_multiple %27, 8 : i32
    %29 = arith.index_cast %28 : i32 to index
    %c0_19 = arith.constant 0 : index
    %30 = vector.load %arg6[%29, %c0_19] : memref<64x128xf32, #tpu.memory_space<vmem>>, vector<8x128xf32>
    %cst_20 = arith.constant dense<0.000000e+00> : vector<8x128xf32>
    %31 = tpu.matmul %26, %11, %cst_20 {dimension_numbers = #tpu.dot_dimension_numbers<[1], [0], [0], [1], [0, 0, 1, 1], [], []>} : vector<8x128xf32>, vector<128x128xf32>, vector<8x128xf32> -> vector<8x128xf32>
    %32 = arith.addf %30, %31 : vector<8x128xf32>
    %33 = math.tanh %32 : vector<8x128xf32>
    %c3_i32 = arith.constant 3 : i32
    %c8_i32_21 = arith.constant 8 : i32
    %34 = arith.muli %c3_i32, %c8_i32_21 : i32
    %35 = tpu.assume_multiple %34, 8 : i32
    %36 = arith.index_cast %35 : i32 to index
    %c0_22 = arith.constant 0 : index
    %37 = vector.load %arg6[%36, %c0_22] : memref<64x128xf32, #tpu.memory_space<vmem>>, vector<8x128xf32>
    %cst_23 = arith.constant dense<0.000000e+00> : vector<8x128xf32>
    %38 = tpu.matmul %33, %11, %cst_23 {dimension_numbers = #tpu.dot_dimension_numbers<[1], [0], [0], [1], [0, 0, 1, 1], [], []>} : vector<8x128xf32>, vector<128x128xf32>, vector<8x128xf32> -> vector<8x128xf32>
    %39 = arith.addf %37, %38 : vector<8x128xf32>
    %40 = math.tanh %39 : vector<8x128xf32>
    %c4_i32 = arith.constant 4 : i32
    %c8_i32_24 = arith.constant 8 : i32
    %41 = arith.muli %c4_i32, %c8_i32_24 : i32
    %42 = tpu.assume_multiple %41, 8 : i32
    %43 = arith.index_cast %42 : i32 to index
    %c0_25 = arith.constant 0 : index
    %44 = vector.load %arg6[%43, %c0_25] : memref<64x128xf32, #tpu.memory_space<vmem>>, vector<8x128xf32>
    %cst_26 = arith.constant dense<0.000000e+00> : vector<8x128xf32>
    %45 = tpu.matmul %40, %11, %cst_26 {dimension_numbers = #tpu.dot_dimension_numbers<[1], [0], [0], [1], [0, 0, 1, 1], [], []>} : vector<8x128xf32>, vector<128x128xf32>, vector<8x128xf32> -> vector<8x128xf32>
    %46 = arith.addf %44, %45 : vector<8x128xf32>
    %47 = math.tanh %46 : vector<8x128xf32>
    %c5_i32 = arith.constant 5 : i32
    %c8_i32_27 = arith.constant 8 : i32
    %48 = arith.muli %c5_i32, %c8_i32_27 : i32
    %49 = tpu.assume_multiple %48, 8 : i32
    %50 = arith.index_cast %49 : i32 to index
    %c0_28 = arith.constant 0 : index
    %51 = vector.load %arg6[%50, %c0_28] : memref<64x128xf32, #tpu.memory_space<vmem>>, vector<8x128xf32>
    %cst_29 = arith.constant dense<0.000000e+00> : vector<8x128xf32>
    %52 = tpu.matmul %47, %11, %cst_29 {dimension_numbers = #tpu.dot_dimension_numbers<[1], [0], [0], [1], [0, 0, 1, 1], [], []>} : vector<8x128xf32>, vector<128x128xf32>, vector<8x128xf32> -> vector<8x128xf32>
    %53 = arith.addf %51, %52 : vector<8x128xf32>
    %54 = math.tanh %53 : vector<8x128xf32>
    %c6_i32 = arith.constant 6 : i32
    %c8_i32_30 = arith.constant 8 : i32
    %55 = arith.muli %c6_i32, %c8_i32_30 : i32
    %56 = tpu.assume_multiple %55, 8 : i32
    %57 = arith.index_cast %56 : i32 to index
    %c0_31 = arith.constant 0 : index
    %58 = vector.load %arg6[%57, %c0_31] : memref<64x128xf32, #tpu.memory_space<vmem>>, vector<8x128xf32>
    %cst_32 = arith.constant dense<0.000000e+00> : vector<8x128xf32>
    %59 = tpu.matmul %54, %11, %cst_32 {dimension_numbers = #tpu.dot_dimension_numbers<[1], [0], [0], [1], [0, 0, 1, 1], [], []>} : vector<8x128xf32>, vector<128x128xf32>, vector<8x128xf32> -> vector<8x128xf32>
    %60 = arith.addf %58, %59 : vector<8x128xf32>
    %61 = math.tanh %60 : vector<8x128xf32>
    %c7_i32 = arith.constant 7 : i32
    %c8_i32_33 = arith.constant 8 : i32
    %62 = arith.muli %c7_i32, %c8_i32_33 : i32
    %63 = tpu.assume_multiple %62, 8 : i32
    %64 = arith.index_cast %63 : i32 to index
    %c0_34 = arith.constant 0 : index
    %65 = vector.load %arg6[%64, %c0_34] : memref<64x128xf32, #tpu.memory_space<vmem>>, vector<8x128xf32>
    %cst_35 = arith.constant dense<0.000000e+00> : vector<8x128xf32>
    %66 = tpu.matmul %61, %11, %cst_35 {dimension_numbers = #tpu.dot_dimension_numbers<[1], [0], [0], [1], [0, 0, 1, 1], [], []>} : vector<8x128xf32>, vector<128x128xf32>, vector<8x128xf32> -> vector<8x128xf32>
    %67 = arith.addf %65, %66 : vector<8x128xf32>
    %68 = math.tanh %67 : vector<8x128xf32>
    %c8_i32_36 = arith.constant 8 : i32
    %c0_37 = arith.constant 0 : index
    %c0_38 = arith.constant 0 : index
    %69 = vector.load %arg5[%c0_37, %c0_38] : memref<8x128xf32, #tpu.memory_space<vmem>>, vector<8x128xf32>
    tpu.vector_store %arg5[%c0_37, %c0_38], %68 {strides = array<i32>} : memref<8x128xf32, #tpu.memory_space<vmem>>, vector<8x128xf32>,
    return
  }
  func.func @transform_0(%arg0: i32) -> (i32, i32) {
    %c0_i32 = arith.constant 0 : i32
    %c0_i32_0 = arith.constant 0 : i32
    return %arg0, %c0_i32 : i32, i32
  }
  func.func @transform_1(%arg0: i32) -> (i32, i32) {
    %c0_i32 = arith.constant 0 : i32
    %c0_i32_0 = arith.constant 0 : i32
    %c0_i32_1 = arith.constant 0 : i32
    return %c0_i32, %c0_i32_0 : i32, i32
  }
  func.func @transform_2(%arg0: i32) -> (i32, i32) {
    %c0_i32 = arith.constant 0 : i32
    %c0_i32_0 = arith.constant 0 : i32
    %c0_i32_1 = arith.constant 0 : i32
    return %c0_i32, %c0_i32_0 : i32, i32
  }
  func.func @transform_3(%arg0: i32) -> (i32, i32) {
    %c0_i32 = arith.constant 0 : i32
    %c0_i32_0 = arith.constant 0 : i32
    %c0_i32_1 = arith.constant 0 : i32
    return %c0_i32, %c0_i32_0 : i32, i32
  }
  func.func @transform_4(%arg0: i32) -> (i32, i32) {
    %c0_i32 = arith.constant 0 : i32
    %c0_i32_0 = arith.constant 0 : i32
    %c0_i32_1 = arith.constant 0 : i32
    return %c0_i32, %c0_i32_0 : i32, i32
  }
}

</mosaic_0001>

<llo_original>
// kernel: tpu_custom_call.1
$region0: #{tpu_custom_call.1}
  #allocation0 [shape = 'u32[]', space=smem, size = 0x4, offset = 0x4, fixed_abs, tag = 'smem constant byte address 0x4 - core index']
  #allocation1 [shape = 'u32[144,128]{1,0:T(1,128)}', space=vmem, size = 0x12000, scoped, tag = 'internal scratch']
  #allocation2 [shape = 'f32[64,128]{1,0:T(8,128)}', space=vmem, size = 0x8000, scoped, tag = 'scratch operand']
  %s0 = inlined_call_operand.hbm [shape: f32[64,128], index: 0, kind: input, shape index: {}]
  %s1 = inlined_call_operand.hbm [shape: f32[128,128], index: 1, kind: input, shape index: {}]
  %s2 = inlined_call_operand.hbm [shape: f32[128,128], index: 2, kind: input, shape index: {}]
  %s3 = inlined_call_operand.vmem [shape: f32[1,128], index: 3, kind: input, shape index: {}]
  %s4 = inlined_call_operand.hbm [shape: f32[8,128], index: 4, kind: output, shape index: {}]
  %s5 = sld [smem:[#allocation0]]
  $region42: #{tpu_custom_call.1} parent=0
    _
  %s7 = ssub.s32 1, %s5
  %s8 = scalar_select 0, %s7, %s5
  $region1: #{tpu_custom_call.1} parent=0
    #allocation3 [shape = 'u8[32768]{0}', space=vmem, size = 0x8000, scoped, tag = 'input window, operand 0, single buffered']
    #allocation4 [shape = 's32[1]{0}', space=sflag, size = 0x4, scoped, tag = 'scoped memory for tpu_custom_call.1']
    #allocation5 [shape = 's32[1]{0}', space=sflag, size = 0x4, scoped, tag = 'scoped memory for tpu_custom_call.1']
    #allocation6 [shape = 'u8[65536]{0}', space=vmem, size = 0x10000, scoped, tag = 'input window, operand 1, single buffered']
    #allocation7 [shape = 's32[1]{0}', space=sflag, size = 0x4, scoped, tag = 'scoped memory for tpu_custom_call.1']
    #allocation8 [shape = 'u8[65536]{0}', space=vmem, size = 0x10000, scoped, tag = 'input window, operand 2, single buffered']
    #allocation9 [shape = 'u8[4096]{0}', space=vmem, size = 0x1000, scoped, tag = 'output window, operand 0, single buffered']
    %9 = vsyncpa [#allocation4], 0
    %10 = vsyncpa [#allocation7], 0
    %11 = vsyncpa [#allocation5], 0
    // Predicated region
    $region2: #{tpu_custom_call.1} parent=1 // pred_check
      _
    $region3: #{tpu_custom_call.1} parent=1 // pred_check_branch
      %13 = sbr.rel (0) target = $region5
    $region4: #{tpu_custom_call.1} parent=1 // pred_region
      %s15 = ssub.s32 1024, 1024
      %16 = vsyncadd [#allocation4], %s15
      %s17 = sshll.u32 [#allocation3], 4
      %s18 = int_to_ptr.vmem [resolvable:$true] %s17
      %23 = dma.hbm_to_vmem [thread:$0]  %s0, 1024, %s18, [#allocation4], 128, 128, 8
    $region5: #{tpu_custom_call.1} parent=1 // pred_fallthru
      _
    // Predicated region
    $region6: #{tpu_custom_call.1} parent=1 // pred_check
      _
    $region7: #{tpu_custom_call.1} parent=1 // pred_check_branch
      %25 = sbr.rel (0) target = $region9
    $region8: #{tpu_custom_call.1} parent=1 // pred_region
      %s27 = ssub.s32 2048, 2048
      %28 = vsyncadd [#allocation7], %s27
      %s29 = sshll.u32 [#allocation6], 4
      %s30 = int_to_ptr.vmem [resolvable:$true] %s29
      %35 = dma.hbm_to_vmem [thread:$0]  %s1, 2048, %s30, [#allocation7], 128, 128, 8
    $region9: #{tpu_custom_call.1} parent=1 // pred_fallthru
      _
    // Predicated region
    $region10: #{tpu_custom_call.1} parent=1 // pred_check
      _
    $region11: #{tpu_custom_call.1} parent=1 // pred_check_branch
      %37 = sbr.rel (0) target = $region13
    $region12: #{tpu_custom_call.1} parent=1 // pred_region
      %s39 = ssub.s32 2048, 2048
      %40 = vsyncadd [#allocation7], %s39
      %s41 = sshll.u32 [#allocation8], 4
      %s42 = int_to_ptr.vmem [resolvable:$true] %s41
      %47 = dma.hbm_to_vmem [thread:$0]  %s2, 2048, %s42, [#allocation7], 128, 128, 8
    $region13: #{tpu_custom_call.1} parent=1 // pred_fallthru
      _
    // Predicated region
    $region14: #{tpu_custom_call.1} parent=1 // pred_check
      _
    $region15: #{tpu_custom_call.1} parent=1 // pred_check_branch
      %49 = sbr.rel (0) target = $region17
    $region16: #{tpu_custom_call.1} parent=1 // pred_region
      _
    $region17: #{tpu_custom_call.1} parent=1 // pred_fallthru
      _
    // Predicated region
    $region18: #{tpu_custom_call.1} parent=1 // pred_check
      _
    $region19: #{tpu_custom_call.1} parent=1 // pred_check_branch
      %51 = sbr.rel (0) target = $region21
    $region20: #{tpu_custom_call.1} parent=1 // pred_region
      %52 = dma.done [#allocation4], 1024
    $region21: #{tpu_custom_call.1} parent=1 // pred_fallthru
      _
    // Predicated region
    $region22: #{tpu_custom_call.1} parent=1 // pred_check
      _
    $region23: #{tpu_custom_call.1} parent=1 // pred_check_branch
      %54 = sbr.rel (0) target = $region25
    $region24: #{tpu_custom_call.1} parent=1 // pred_region
      %55 = dma.done [#allocation7], 2048
    $region25: #{tpu_custom_call.1} parent=1 // pred_fallthru
      _
    // Predicated region
    $region26: #{tpu_custom_call.1} parent=1 // pred_check
      _
    $region27: #{tpu_custom_call.1} parent=1 // pred_check_branch
      %57 = sbr.rel (0) target = $region29
    $region28: #{tpu_custom_call.1} parent=1 // pred_region
      %58 = dma.done [#allocation7], 2048
    $region29: #{tpu_custom_call.1} parent=1 // pred_fallthru
      _
    %p59 = scmp.eq.s32.totalorder 0, 0
    // Predicated region
    $region30: #{tpu_custom_call.1} parent=1 // pred_check
      %p60 = pneg %p59
    $region31: #{tpu_custom_call.1} parent=1 // pred_check_branch
      %62 = sbr.rel (%p60) target = $region33
    $region32: #{tpu_custom_call.1} parent=1 // pred_region
      %63 = vst [vmem:[#allocation9] sm:$0xff] 0.0
    $region33: #{tpu_custom_call.1} parent=1 // pred_fallthru
      _
    %v64 = vld [vmem:[#allocation3] sm:$0xff]
    %v65 = vld [vmem:[#allocation3 + $0x8] sm:$0xff]
    %v66 = vld [vmem:[#allocation3 + $0x10] sm:$0xff]
    %v67 = vld [vmem:[#allocation3 + $0x18] sm:$0xff]
    %v68 = vld [vmem:[#allocation3 + $0x20] sm:$0xff]
    %v69 = vld [vmem:[#allocation3 + $0x28] sm:$0xff]
    %v70 = vld [vmem:[#allocation3 + $0x30] sm:$0xff]
    %v71 = vld [vmem:[#allocation3 + $0x38] sm:$0xff]
    %v72 = vld [vmem:[#allocation6] sm:$0xff]
    %v73 = vld [vmem:[#allocation6 + $0x8] sm:$0xff]
    %v74 = vld [vmem:[#allocation6 + $0x10] sm:$0xff]
    %v75 = vld [vmem:[#allocation6 + $0x18] sm:$0xff]
    %v76 = vld [vmem:[#allocation6 + $0x20] sm:$0xff]
    %v77 = vld [vmem:[#allocation6 + $0x28] sm:$0xff]
    %v78 = vld [vmem:[#allocation6 + $0x30] sm:$0xff]
    %v79 = vld [vmem:[#allocation6 + $0x38] sm:$0xff]
    %v80 = vld [vmem:[#allocation6 + $0x40] sm:$0xff]
    %v81 = vld [vmem:[#allocation6 + $0x48] sm:$0xff]
    %v82 = vld [vmem:[#allocation6 + $0x50] sm:$0xff]
    %v83 = vld [vmem:[#allocation6 + $0x58] sm:$0xff]
    %v84 = vld [vmem:[#allocation6 + $0x60] sm:$0xff]
    %v85 = vld [vmem:[#allocation6 + $0x68] sm:$0xff]
    %v86 = vld [vmem:[#allocation6 + $0x70] sm:$0xff]
    %v87 = vld [vmem:[#allocation6 + $0x78] sm:$0xff]
    %v88 = vld [vmem:[%s3] sm:$0x1]
    %v90 = vlaneseq
    %v91 = vshrl.u32 %v90, 7
    %v92 = vsub.s32 0, %v91
    %v93 = vrot.slane %v88, %v92
    %95 = vmatprep.subr.mxu0 0.0
    %96 = vmatpush1.msra.mxu0 %v72
    %97 = vmatprep.subr.mxu0 0.0
    %98 = vmatpush1.msra.mxu0 %v73
    %99 = vmatprep.subr.mxu0 0.0
    %100 = vmatpush1.msra.mxu0 %v74
    %101 = vmatprep.subr.mxu0 0.0
    %102 = vmatpush1.msra.mxu0 %v75
    %103 = vmatprep.subr.mxu0 0.0
    %104 = vmatpush1.msra.mxu0 %v76
    %105 = vmatprep.subr.mxu0 0.0
    %106 = vmatpush1.msra.mxu0 %v77
    %107 = vmatprep.subr.mxu0 0.0
    %108 = vmatpush1.msra.mxu0 %v78
    %109 = vmatprep.subr.mxu0 0.0
    %110 = vmatpush1.msra.mxu0 %v79
    %111 = vmatprep.subr.mxu0 0.0
    %112 = vmatpush1.msra.mxu0 %v80
    %113 = vmatprep.subr.mxu0 0.0
    %114 = vmatpush1.msra.mxu0 %v81
    %115 = vmatprep.subr.mxu0 0.0
    %116 = vmatpush1.msra.mxu0 %v82
    %117 = vmatprep.subr.mxu0 0.0
    %118 = vmatpush1.msra.mxu0 %v83
    %119 = vmatprep.subr.mxu0 0.0
    %120 = vmatpush1.msra.mxu0 %v84
    %121 = vmatprep.subr.mxu0 0.0
    %122 = vmatpush1.msra.mxu0 %v85
    %123 = vmatprep.subr.mxu0 0.0
    %124 = vmatpush1.msra.mxu0 %v86
    %125 = vmatprep.subr.mxu0 0.0
    %126 = vmatpush1.msra.mxu0 %v87
    %127 = vmatprep.subr.mxu0 0.0
    %128 = vmatpush1.msra.mxu0 0.0
    %129 = vmatprep.subr.mxu0 0.0
    %130 = vmatpush1.msra.mxu0 0.0
    %131 = vmatprep.subr.mxu0 0.0
    %132 = vmatpush1.msra.mxu0 0.0
    %133 = vmatprep.subr.mxu0 0.0
    %134 = vmatpush1.msra.mxu0 0.0
    %135 = vmatprep.subr.mxu0 0.0
    %136 = vmatpush1.msra.mxu0 0.0
    %137 = vmatprep.subr.mxu0 0.0
    %138 = vmatpush1.msra.mxu0 0.0
    %139 = vmatprep.subr.mxu0 0.0
    %140 = vmatpush1.msra.mxu0 0.0
    %141 = vmatprep.subr.mxu0 0.0
    %142 = vmatpush1.msra.mxu0 0.0
    %143 = vmatprep.subr.mxu0 0.0
    %144 = vmatpush1.msra.mxu0 0.0
    %145 = vmatprep.subr.mxu0 0.0
    %146 = vmatpush1.msra.mxu0 0.0
    %147 = vmatprep.subr.mxu0 0.0
    %148 = vmatpush1.msra.mxu0 0.0
    %149 = vmatprep.subr.mxu0 0.0
    %150 = vmatpush1.msra.mxu0 0.0
    %151 = vmatprep.subr.mxu0 0.0
    %152 = vmatpush1.msra.mxu0 0.0
    %153 = vmatprep.subr.mxu0 0.0
    %154 = vmatpush1.msra.mxu0 0.0
    %155 = vmatprep.subr.mxu0 0.0
    %156 = vmatpush1.msra.mxu0 0.0
    %157 = vmatprep.subr.mxu0 0.0
    %158 = vmatpush1.msra.mxu0 0.0
    %159 = vmatprep.mubr.f32.mxu0 0.0
    %160 = vmatmul.mubr.f32.gmra.mrb[0].mxu0 %v64
    %v161 = vpop.f32.mrb[0].mxu0
    %v162 = vadd.f32 %v93, %v161
    %v163 = vpop.f32.mrb[0].mxu0
    %164 = vmatprep.mubr.f32.mxu0 0.0
    %165 = vmatmul.mubr.f32.gmra.mrb[0].mxu0 %v65
    %v166 = vpop.f32.mrb[0].mxu0
    %v167 = vadd.f32 %v93, %v166
    %v168 = vpop.f32.mrb[0].mxu0
    %169 = vmatprep.mubr.f32.mxu0 0.0
    %170 = vmatmul.mubr.f32.gmra.mrb[0].mxu0 %v66
    %v171 = vpop.f32.mrb[0].mxu0
    %v172 = vadd.f32 %v93, %v171
    %v173 = vpop.f32.mrb[0].mxu0
    %174 = vmatprep.mubr.f32.mxu0 0.0
    %175 = vmatmul.mubr.f32.gmra.mrb[0].mxu0 %v67
    %v176 = vpop.f32.mrb[0].mxu0
    %v177 = vadd.f32 %v93, %v176
    %v178 = vpop.f32.mrb[0].mxu0
    %179 = vmatprep.mubr.f32.mxu0 0.0
    %180 = vmatmul.mubr.f32.gmra.mrb[0].mxu0 %v68
    %v181 = vpop.f32.mrb[0].mxu0
    %v182 = vadd.f32 %v93, %v181
    %v183 = vpop.f32.mrb[0].mxu0
    %184 = vmatprep.mubr.f32.mxu0 0.0
    %185 = vmatmul.mubr.f32.gmra.mrb[0].mxu0 %v69
    %v186 = vpop.f32.mrb[0].mxu0
    %v187 = vadd.f32 %v93, %v186
    %v188 = vpop.f32.mrb[0].mxu0
    %189 = vmatprep.mubr.f32.mxu0 0.0
    %190 = vmatmul.mubr.f32.gmra.mrb[0].mxu0 %v70
    %v191 = vpop.f32.mrb[0].mxu0
    %v192 = vadd.f32 %v93, %v191
    %v193 = vpop.f32.mrb[0].mxu0
    %194 = vmatprep.mubr.f32.mxu0 0.0
    %195 = vmatmul.mubr.f32.gmra.mrb[0].mxu0 %v71
    %v196 = vpop.f32.mrb[0].mxu0
    %v197 = vadd.f32 %v93, %v196
    %v198 = vpop.f32.mrb[0].mxu0
    %199 = vdwg.mxu0
    %200 = vst [vmem:[#allocation2] sm:$0xff] %v162
    %201 = vst [vmem:[#allocation2 + $0x8] sm:$0xff] %v167
    %202 = vst [vmem:[#allocation2 + $0x10] sm:$0xff] %v172
    %203 = vst [vmem:[#allocation2 + $0x18] sm:$0xff] %v177
    %204 = vst [vmem:[#allocation2 + $0x20] sm:$0xff] %v182
    %205 = vst [vmem:[#allocation2 + $0x28] sm:$0xff] %v187
    %206 = vst [vmem:[#allocation2 + $0x30] sm:$0xff] %v192
    %207 = vst [vmem:[#allocation2 + $0x38] sm:$0xff] %v197
    %v208 = vld [vmem:[#allocation8] sm:$0xff]
    %v209 = vld [vmem:[#allocation8 + $0x8] sm:$0xff]
    %v210 = vld [vmem:[#allocation8 + $0x10] sm:$0xff]
    %v211 = vld [vmem:[#allocation8 + $0x18] sm:$0xff]
    %v212 = vld [vmem:[#allocation8 + $0x20] sm:$0xff]
    %v213 = vld [vmem:[#allocation8 + $0x28] sm:$0xff]
    %v214 = vld [vmem:[#allocation8 + $0x30] sm:$0xff]
    %v215 = vld [vmem:[#allocation8 + $0x38] sm:$0xff]
    %v216 = vld [vmem:[#allocation8 + $0x40] sm:$0xff]
    %v217 = vld [vmem:[#allocation8 + $0x48] sm:$0xff]
    %v218 = vld [vmem:[#allocation8 + $0x50] sm:$0xff]
    %v219 = vld [vmem:[#allocation8 + $0x58] sm:$0xff]
    %v220 = vld [vmem:[#allocation8 + $0x60] sm:$0xff]
    %v221 = vld [vmem:[#allocation8 + $0x68] sm:$0xff]
    %v222 = vld [vmem:[#allocation8 + $0x70] sm:$0xff]
    %v223 = vld [vmem:[#allocation8 + $0x78] sm:$0xff]
    %v224 = vld [vmem:[#allocation9] sm:$0xff]
    %v225 = vld [vmem:[#allocation2] sm:$0xff]
    %226 = vmatprep.subr.mxu0 0.0
    %227 = vmatpush1.msra.mxu0 %v208
    %228 = vmatprep.subr.mxu0 0.0
    %229 = vmatpush1.msra.mxu0 %v209
    %230 = vmatprep.subr.mxu0 0.0
    %231 = vmatpush1.msra.mxu0 %v210
    %232 = vmatprep.subr.mxu0 0.0
    %233 = vmatpush1.msra.mxu0 %v211
    %234 = vmatprep.subr.mxu0 0.0
    %235 = vmatpush1.msra.mxu0 %v212
    %236 = vmatprep.subr.mxu0 0.0
    %237 = vmatpush1.msra.mxu0 %v213
    %238 = vmatprep.subr.mxu0 0.0
    %239 = vmatpush1.msra.mxu0 %v214
    %240 = vmatprep.subr.mxu0 0.0
    %241 = vmatpush1.msra.mxu0 %v215
    %242 = vmatprep.subr.mxu0 0.0
    %243 = vmatpush1.msra.mxu0 %v216
    %244 = vmatprep.subr.mxu0 0.0
    %245 = vmatpush1.msra.mxu0 %v217
    %246 = vmatprep.subr.mxu0 0.0
    %247 = vmatpush1.msra.mxu0 %v218
    %248 = vmatprep.subr.mxu0 0.0
    %249 = vmatpush1.msra.mxu0 %v219
    %250 = vmatprep.subr.mxu0 0.0
    %251 = vmatpush1.msra.mxu0 %v220
    %252 = vmatprep.subr.mxu0 0.0
    %253 = vmatpush1.msra.mxu0 %v221
    %254 = vmatprep.subr.mxu0 0.0
    %255 = vmatpush1.msra.mxu0 %v222
    %256 = vmatprep.subr.mxu0 0.0
    %257 = vmatpush1.msra.mxu0 %v223
    %258 = vmatprep.subr.mxu0 0.0
    %259 = vmatpush1.msra.mxu0 0.0
    %260 = vmatprep.subr.mxu0 0.0
    %261 = vmatpush1.msra.mxu0 0.0
    %262 = vmatprep.subr.mxu0 0.0
    %263 = vmatpush1.msra.mxu0 0.0
    %264 = vmatprep.subr.mxu0 0.0
    %265 = vmatpush1.msra.mxu0 0.0
    %266 = vmatprep.subr.mxu0 0.0
    %267 = vmatpush1.msra.mxu0 0.0
    %268 = vmatprep.subr.mxu0 0.0
    %269 = vmatpush1.msra.mxu0 0.0
    %270 = vmatprep.subr.mxu0 0.0
    %271 = vmatpush1.msra.mxu0 0.0
    %272 = vmatprep.subr.mxu0 0.0
    %273 = vmatpush1.msra.mxu0 0.0
    %274 = vmatprep.subr.mxu0 0.0
    %275 = vmatpush1.msra.mxu0 0.0
    %276 = vmatprep.subr.mxu0 0.0
    %277 = vmatpush1.msra.mxu0 0.0
    %278 = vmatprep.subr.mxu0 0.0
    %279 = vmatpush1.msra.mxu0 0.0
    %280 = vmatprep.subr.mxu0 0.0
    %281 = vmatpush1.msra.mxu0 0.0
    %282 = vmatprep.subr.mxu0 0.0
    %283 = vmatpush1.msra.mxu0 0.0
    %284 = vmatprep.subr.mxu0 0.0
    %285 = vmatpush1.msra.mxu0 0.0
    %286 = vmatprep.subr.mxu0 0.0
    %287 = vmatpush1.msra.mxu0 0.0
    %288 = vmatprep.subr.mxu0 0.0
    %289 = vmatpush1.msra.mxu0 0.0
    %290 = vmatprep.mubr.f32.mxu0 0.0
    %291 = vmatmul.mubr.f32.gmra.mrb[0].mxu0 %v224
    %v292 = vpop.f32.mrb[0].mxu0
    %v293 = vadd.f32 0.0, %v292
    %v294 = vpop.f32.mrb[0].mxu0
    %295 = vdwg.mxu0
    %v296 = vadd.f32 %v225, %v293
    %v297 = vtanh.pop %v296
    %s298 = scalar_lea.vmem [#allocation2], 8
    %v299 = vld [vmem:[%s298] sm:$0xff]
    %300 = vmatprep.subr.mxu0 0.0
    %301 = vmatpush1.msra.mxu0 %v208
    %302 = vmatprep.subr.mxu0 0.0
    %303 = vmatpush1.msra.mxu0 %v209
    %304 = vmatprep.subr.mxu0 0.0
    %305 = vmatpush1.msra.mxu0 %v210
    %306 = vmatprep.subr.mxu0 0.0
    %307 = vmatpush1.msra.mxu0 %v211
    %308 = vmatprep.subr.mxu0 0.0
    %309 = vmatpush1.msra.mxu0 %v212
    %310 = vmatprep.subr.mxu0 0.0
    %311 = vmatpush1.msra.mxu0 %v213
    %312 = vmatprep.subr.mxu0 0.0
    %313 = vmatpush1.msra.mxu0 %v214
    %314 = vmatprep.subr.mxu0 0.0
    %315 = vmatpush1.msra.mxu0 %v215
    %316 = vmatprep.subr.mxu0 0.0
    %317 = vmatpush1.msra.mxu0 %v216
    %318 = vmatprep.subr.mxu0 0.0
    %319 = vmatpush1.msra.mxu0 %v217
    %320 = vmatprep.subr.mxu0 0.0
    %321 = vmatpush1.msra.mxu0 %v218
    %322 = vmatprep.subr.mxu0 0.0
    %323 = vmatpush1.msra.mxu0 %v219
    %324 = vmatprep.subr.mxu0 0.0
    %325 = vmatpush1.msra.mxu0 %v220
    %326 = vmatprep.subr.mxu0 0.0
    %327 = vmatpush1.msra.mxu0 %v221
    %328 = vmatprep.subr.mxu0 0.0
    %329 = vmatpush1.msra.mxu0 %v222
    %330 = vmatprep.subr.mxu0 0.0
    %331 = vmatpush1.msra.mxu0 %v223
    %332 = vmatprep.subr.mxu0 0.0
    %333 = vmatpush1.msra.mxu0 0.0
    %334 = vmatprep.subr.mxu0 0.0
    %335 = vmatpush1.msra.mxu0 0.0
    %336 = vmatprep.subr.mxu0 0.0
    %337 = vmatpush1.msra.mxu0 0.0
    %338 = vmatprep.subr.mxu0 0.0
    %339 = vmatpush1.msra.mxu0 0.0
    %340 = vmatprep.subr.mxu0 0.0
    %341 = vmatpush1.msra.mxu0 0.0
    %342 = vmatprep.subr.mxu0 0.0
    %343 = vmatpush1.msra.mxu0 0.0
    %344 = vmatprep.subr.mxu0 0.0
    %345 = vmatpush1.msra.mxu0 0.0
    %346 = vmatprep.subr.mxu0 0.0
    %347 = vmatpush1.msra.mxu0 0.0
    %348 = vmatprep.subr.mxu0 0.0
    %349 = vmatpush1.msra.mxu0 0.0
    %350 = vmatprep.subr.mxu0 0.0
    %351 = vmatpush1.msra.mxu0 0.0
    %352 = vmatprep.subr.mxu0 0.0
    %353 = vmatpush1.msra.mxu0 0.0
    %354 = vmatprep.subr.mxu0 0.0
    %355 = vmatpush1.msra.mxu0 0.0
    %356 = vmatprep.subr.mxu0 0.0
    %357 = vmatpush1.msra.mxu0 0.0
    %358 = vmatprep.subr.mxu0 0.0
    %359 = vmatpush1.msra.mxu0 0.0
    %360 = vmatprep.subr.mxu0 0.0
    %361 = vmatpush1.msra.mxu0 0.0
    %362 = vmatprep.subr.mxu0 0.0
    %363 = vmatpush1.msra.mxu0 0.0
    %364 = vmatprep.mubr.f32.mxu0 0.0
    %365 = vmatmul.mubr.f32.gmra.mrb[0].mxu0 %v297
    %v366 = vpop.f32.mrb[0].mxu0
    %v367 = vadd.f32 0.0, %v366
    %v368 = vpop.f32.mrb[0].mxu0
    %369 = vdwg.mxu0
    %v370 = vadd.f32 %v299, %v367
    %v371 = vtanh.pop %v370
    %s372 = scalar_lea.vmem [#allocation2], 16
    %v373 = vld [vmem:[%s372] sm:$0xff]
    %374 = vmatprep.subr.mxu0 0.0
    %375 = vmatpush1.msra.mxu0 %v208
    %376 = vmatprep.subr.mxu0 0.0
    %377 = vmatpush1.msra.mxu0 %v209
    %378 = vmatprep.subr.mxu0 0.0
    %379 = vmatpush1.msra.mxu0 %v210
    %380 = vmatprep.subr.mxu0 0.0
    %381 = vmatpush1.msra.mxu0 %v211
    %382 = vmatprep.subr.mxu0 0.0
    %383 = vmatpush1.msra.mxu0 %v212
    %384 = vmatprep.subr.mxu0 0.0
    %385 = vmatpush1.msra.mxu0 %v213
    %386 = vmatprep.subr.mxu0 0.0
    %387 = vmatpush1.msra.mxu0 %v214
    %388 = vmatprep.subr.mxu0 0.0
    %389 = vmatpush1.msra.mxu0 %v215
    %390 = vmatprep.subr.mxu0 0.0
    %391 = vmatpush1.msra.mxu0 %v216
    %392 = vmatprep.subr.mxu0 0.0
    %393 = vmatpush1.msra.mxu0 %v217
    %394 = vmatprep.subr.mxu0 0.0
    %395 = vmatpush1.msra.mxu0 %v218
    %396 = vmatprep.subr.mxu0 0.0
    %397 = vmatpush1.msra.mxu0 %v219
    %398 = vmatprep.subr.mxu0 0.0
    %399 = vmatpush1.msra.mxu0 %v220
    %400 = vmatprep.subr.mxu0 0.0
    %401 = vmatpush1.msra.mxu0 %v221
    %402 = vmatprep.subr.mxu0 0.0
    %403 = vmatpush1.msra.mxu0 %v222
    %404 = vmatprep.subr.mxu0 0.0
    %405 = vmatpush1.msra.mxu0 %v223
    %406 = vmatprep.subr.mxu0 0.0
    %407 = vmatpush1.msra.mxu0 0.0
    %408 = vmatprep.subr.mxu0 0.0
    %409 = vmatpush1.msra.mxu0 0.0
    %410 = vmatprep.subr.mxu0 0.0
    %411 = vmatpush1.msra.mxu0 0.0
    %412 = vmatprep.subr.mxu0 0.0
    %413 = vmatpush1.msra.mxu0 0.0
    %414 = vmatprep.subr.mxu0 0.0
    %415 = vmatpush1.msra.mxu0 0.0
    %416 = vmatprep.subr.mxu0 0.0
    %417 = vmatpush1.msra.mxu0 0.0
    %418 = vmatprep.subr.mxu0 0.0
    %419 = vmatpush1.msra.mxu0 0.0
    %420 = vmatprep.subr.mxu0 0.0
    %421 = vmatpush1.msra.mxu0 0.0
    %422 = vmatprep.subr.mxu0 0.0
    %423 = vmatpush1.msra.mxu0 0.0
    %424 = vmatprep.subr.mxu0 0.0
    %425 = vmatpush1.msra.mxu0 0.0
    %426 = vmatprep.subr.mxu0 0.0
    %427 = vmatpush1.msra.mxu0 0.0
    %428 = vmatprep.subr.mxu0 0.0
    %429 = vmatpush1.msra.mxu0 0.0
    %430 = vmatprep.subr.mxu0 0.0
    %431 = vmatpush1.msra.mxu0 0.0
    %432 = vmatprep.subr.mxu0 0.0
    %433 = vmatpush1.msra.mxu0 0.0
    %434 = vmatprep.subr.mxu0 0.0
    %435 = vmatpush1.msra.mxu0 0.0
    %436 = vmatprep.subr.mxu0 0.0
    %437 = vmatpush1.msra.mxu0 0.0
    %438 = vmatprep.mubr.f32.mxu0 0.0
    %439 = vmatmul.mubr.f32.gmra.mrb[0].mxu0 %v371
    %v440 = vpop.f32.mrb[0].mxu0
    %v441 = vadd.f32 0.0, %v440
    %v442 = vpop.f32.mrb[0].mxu0
    %443 = vdwg.mxu0
    %v444 = vadd.f32 %v373, %v441
    %v445 = vtanh.pop %v444
    %s446 = scalar_lea.vmem [#allocation2], 24
    %v447 = vld [vmem:[%s446] sm:$0xff]
    %448 = vmatprep.subr.mxu0 0.0
    %449 = vmatpush1.msra.mxu0 %v208
    %450 = vmatprep.subr.mxu0 0.0
    %451 = vmatpush1.msra.mxu0 %v209
    %452 = vmatprep.subr.mxu0 0.0
    %453 = vmatpush1.msra.mxu0 %v210
    %454 = vmatprep.subr.mxu0 0.0
    %455 = vmatpush1.msra.mxu0 %v211
    %456 = vmatprep.subr.mxu0 0.0
    %457 = vmatpush1.msra.mxu0 %v212
    %458 = vmatprep.subr.mxu0 0.0
    %459 = vmatpush1.msra.mxu0 %v213
    %460 = vmatprep.subr.mxu0 0.0
    %461 = vmatpush1.msra.mxu0 %v214
    %462 = vmatprep.subr.mxu0 0.0
    %463 = vmatpush1.msra.mxu0 %v215
    %464 = vmatprep.subr.mxu0 0.0
    %465 = vmatpush1.msra.mxu0 %v216
    %466 = vmatprep.subr.mxu0 0.0
    %467 = vmatpush1.msra.mxu0 %v217
    %468 = vmatprep.subr.mxu0 0.0
    %469 = vmatpush1.msra.mxu0 %v218
    %470 = vmatprep.subr.mxu0 0.0
    %471 = vmatpush1.msra.mxu0 %v219
    %472 = vmatprep.subr.mxu0 0.0
    %473 = vmatpush1.msra.mxu0 %v220
    %474 = vmatprep.subr.mxu0 0.0
    %475 = vmatpush1.msra.mxu0 %v221
    %476 = vmatprep.subr.mxu0 0.0
    %477 = vmatpush1.msra.mxu0 %v222
    %478 = vmatprep.subr.mxu0 0.0
    %479 = vmatpush1.msra.mxu0 %v223
    %480 = vmatprep.subr.mxu0 0.0
    %481 = vmatpush1.msra.mxu0 0.0
    %482 = vmatprep.subr.mxu0 0.0
    %483 = vmatpush1.msra.mxu0 0.0
    %484 = vmatprep.subr.mxu0 0.0
    %485 = vmatpush1.msra.mxu0 0.0
    %486 = vmatprep.subr.mxu0 0.0
    %487 = vmatpush1.msra.mxu0 0.0
    %488 = vmatprep.subr.mxu0 0.0
    %489 = vmatpush1.msra.mxu0 0.0
    %490 = vmatprep.subr.mxu0 0.0
    %491 = vmatpush1.msra.mxu0 0.0
    %492 = vmatprep.subr.mxu0 0.0
    %493 = vmatpush1.msra.mxu0 0.0
    %494 = vmatprep.subr.mxu0 0.0
    %495 = vmatpush1.msra.mxu0 0.0
    %496 = vmatprep.subr.mxu0 0.0
    %497 = vmatpush1.msra.mxu0 0.0
    %498 = vmatprep.subr.mxu0 0.0
    %499 = vmatpush1.msra.mxu0 0.0
    %500 = vmatprep.subr.mxu0 0.0
    %501 = vmatpush1.msra.mxu0 0.0
    %502 = vmatprep.subr.mxu0 0.0
    %503 = vmatpush1.msra.mxu0 0.0
    %504 = vmatprep.subr.mxu0 0.0
    %505 = vmatpush1.msra.mxu0 0.0
    %506 = vmatprep.subr.mxu0 0.0
    %507 = vmatpush1.msra.mxu0 0.0
    %508 = vmatprep.subr.mxu0 0.0
    %509 = vmatpush1.msra.mxu0 0.0
    %510 = vmatprep.subr.mxu0 0.0
    %511 = vmatpush1.msra.mxu0 0.0
    %512 = vmatprep.mubr.f32.mxu0 0.0
    %513 = vmatmul.mubr.f32.gmra.mrb[0].mxu0 %v445
    %v514 = vpop.f32.mrb[0].mxu0
    %v515 = vadd.f32 0.0, %v514
    %v516 = vpop.f32.mrb[0].mxu0
    %517 = vdwg.mxu0
    %v518 = vadd.f32 %v447, %v515
    %v519 = vtanh.pop %v518
    %s520 = scalar_lea.vmem [#allocation2], 32
    %v521 = vld [vmem:[%s520] sm:$0xff]
    %522 = vmatprep.subr.mxu0 0.0
    %523 = vmatpush1.msra.mxu0 %v208
    %524 = vmatprep.subr.mxu0 0.0
    %525 = vmatpush1.msra.mxu0 %v209
    %526 = vmatprep.subr.mxu0 0.0
    %527 = vmatpush1.msra.mxu0 %v210
    %528 = vmatprep.subr.mxu0 0.0
    %529 = vmatpush1.msra.mxu0 %v211
    %530 = vmatprep.subr.mxu0 0.0
    %531 = vmatpush1.msra.mxu0 %v212
    %532 = vmatprep.subr.mxu0 0.0
    %533 = vmatpush1.msra.mxu0 %v213
    %534 = vmatprep.subr.mxu0 0.0
    %535 = vmatpush1.msra.mxu0 %v214
    %536 = vmatprep.subr.mxu0 0.0
    %537 = vmatpush1.msra.mxu0 %v215
    %538 = vmatprep.subr.mxu0 0.0
    %539 = vmatpush1.msra.mxu0 %v216
    %540 = vmatprep.subr.mxu0 0.0
    %541 = vmatpush1.msra.mxu0 %v217
    %542 = vmatprep.subr.mxu0 0.0
    %543 = vmatpush1.msra.mxu0 %v218
    %544 = vmatprep.subr.mxu0 0.0
    %545 = vmatpush1.msra.mxu0 %v219
    %546 = vmatprep.subr.mxu0 0.0
    %547 = vmatpush1.msra.mxu0 %v220
    %548 = vmatprep.subr.mxu0 0.0
    %549 = vmatpush1.msra.mxu0 %v221
    %550 = vmatprep.subr.mxu0 0.0
    %551 = vmatpush1.msra.mxu0 %v222
    %552 = vmatprep.subr.mxu0 0.0
    %553 = vmatpush1.msra.mxu0 %v223
    %554 = vmatprep.subr.mxu0 0.0
    %555 = vmatpush1.msra.mxu0 0.0
    %556 = vmatprep.subr.mxu0 0.0
    %557 = vmatpush1.msra.mxu0 0.0
    %558 = vmatprep.subr.mxu0 0.0
    %559 = vmatpush1.msra.mxu0 0.0
    %560 = vmatprep.subr.mxu0 0.0
    %561 = vmatpush1.msra.mxu0 0.0
    %562 = vmatprep.subr.mxu0 0.0
    %563 = vmatpush1.msra.mxu0 0.0
    %564 = vmatprep.subr.mxu0 0.0
    %565 = vmatpush1.msra.mxu0 0.0
    %566 = vmatprep.subr.mxu0 0.0
    %567 = vmatpush1.msra.mxu0 0.0
    %568 = vmatprep.subr.mxu0 0.0
    %569 = vmatpush1.msra.mxu0 0.0
    %570 = vmatprep.subr.mxu0 0.0
    %571 = vmatpush1.msra.mxu0 0.0
    %572 = vmatprep.subr.mxu0 0.0
    %573 = vmatpush1.msra.mxu0 0.0
    %574 = vmatprep.subr.mxu0 0.0
    %575 = vmatpush1.msra.mxu0 0.0
    %576 = vmatprep.subr.mxu0 0.0
    %577 = vmatpush1.msra.mxu0 0.0
    %578 = vmatprep.subr.mxu0 0.0
    %579 = vmatpush1.msra.mxu0 0.0
    %580 = vmatprep.subr.mxu0 0.0
    %581 = vmatpush1.msra.mxu0 0.0
    %582 = vmatprep.subr.mxu0 0.0
    %583 = vmatpush1.msra.mxu0 0.0
    %584 = vmatprep.subr.mxu0 0.0
    %585 = vmatpush1.msra.mxu0 0.0
    %586 = vmatprep.mubr.f32.mxu0 0.0
    %587 = vmatmul.mubr.f32.gmra.mrb[0].mxu0 %v519
    %v588 = vpop.f32.mrb[0].mxu0
    %v589 = vadd.f32 0.0, %v588
    %v590 = vpop.f32.mrb[0].mxu0
    %591 = vdwg.mxu0
    %v592 = vadd.f32 %v521, %v589
    %v593 = vtanh.pop %v592
    %s594 = scalar_lea.vmem [#allocation2], 40
    %v595 = vld [vmem:[%s594] sm:$0xff]
    %596 = vmatprep.subr.mxu0 0.0
    %597 = vmatpush1.msra.mxu0 %v208
    %598 = vmatprep.subr.mxu0 0.0
    %599 = vmatpush1.msra.mxu0 %v209
    %600 = vmatprep.subr.mxu0 0.0
    %601 = vmatpush1.msra.mxu0 %v210
    %602 = vmatprep.subr.mxu0 0.0
    %603 = vmatpush1.msra.mxu0 %v211
    %604 = vmatprep.subr.mxu0 0.0
    %605 = vmatpush1.msra.mxu0 %v212
    %606 = vmatprep.subr.mxu0 0.0
    %607 = vmatpush1.msra.mxu0 %v213
    %608 = vmatprep.subr.mxu0 0.0
    %609 = vmatpush1.msra.mxu0 %v214
    %610 = vmatprep.subr.mxu0 0.0
    %611 = vmatpush1.msra.mxu0 %v215
    %612 = vmatprep.subr.mxu0 0.0
    %613 = vmatpush1.msra.mxu0 %v216
    %614 = vmatprep.subr.mxu0 0.0
    %615 = vmatpush1.msra.mxu0 %v217
    %616 = vmatprep.subr.mxu0 0.0
    %617 = vmatpush1.msra.mxu0 %v218
    %618 = vmatprep.subr.mxu0 0.0
    %619 = vmatpush1.msra.mxu0 %v219
    %620 = vmatprep.subr.mxu0 0.0
    %621 = vmatpush1.msra.mxu0 %v220
    %622 = vmatprep.subr.mxu0 0.0
    %623 = vmatpush1.msra.mxu0 %v221
    %624 = vmatprep.subr.mxu0 0.0
    %625 = vmatpush1.msra.mxu0 %v222
    %626 = vmatprep.subr.mxu0 0.0
    %627 = vmatpush1.msra.mxu0 %v223
    %628 = vmatprep.subr.mxu0 0.0
    %629 = vmatpush1.msra.mxu0 0.0
    %630 = vmatprep.subr.mxu0 0.0
    %631 = vmatpush1.msra.mxu0 0.0
    %632 = vmatprep.subr.mxu0 0.0
    %633 = vmatpush1.msra.mxu0 0.0
    %634 = vmatprep.subr.mxu0 0.0
    %635 = vmatpush1.msra.mxu0 0.0
    %636 = vmatprep.subr.mxu0 0.0
    %637 = vmatpush1.msra.mxu0 0.0
    %638 = vmatprep.subr.mxu0 0.0
    %639 = vmatpush1.msra.mxu0 0.0
    %640 = vmatprep.subr.mxu0 0.0
    %641 = vmatpush1.msra.mxu0 0.0
    %642 = vmatprep.subr.mxu0 0.0
    %643 = vmatpush1.msra.mxu0 0.0
    %644 = vmatprep.subr.mxu0 0.0
    %645 = vmatpush1.msra.mxu0 0.0
    %646 = vmatprep.subr.mxu0 0.0
    %647 = vmatpush1.msra.mxu0 0.0
    %648 = vmatprep.subr.mxu0 0.0
    %649 = vmatpush1.msra.mxu0 0.0
    %650 = vmatprep.subr.mxu0 0.0
    %651 = vmatpush1.msra.mxu0 0.0
    %652 = vmatprep.subr.mxu0 0.0
    %653 = vmatpush1.msra.mxu0 0.0
    %654 = vmatprep.subr.mxu0 0.0
    %655 = vmatpush1.msra.mxu0 0.0
    %656 = vmatprep.subr.mxu0 0.0
    %657 = vmatpush1.msra.mxu0 0.0
    %658 = vmatprep.subr.mxu0 0.0
    %659 = vmatpush1.msra.mxu0 0.0
    %660 = vmatprep.mubr.f32.mxu0 0.0
    %661 = vmatmul.mubr.f32.gmra.mrb[0].mxu0 %v593
    %v662 = vpop.f32.mrb[0].mxu0
    %v663 = vadd.f32 0.0, %v662
    %v664 = vpop.f32.mrb[0].mxu0
    %665 = vdwg.mxu0
    %v666 = vadd.f32 %v595, %v663
    %v667 = vtanh.pop %v666
    %s668 = scalar_lea.vmem [#allocation2], 48
    %v669 = vld [vmem:[%s668] sm:$0xff]
    %670 = vmatprep.subr.mxu0 0.0
    %671 = vmatpush1.msra.mxu0 %v208
    %672 = vmatprep.subr.mxu0 0.0
    %673 = vmatpush1.msra.mxu0 %v209
    %674 = vmatprep.subr.mxu0 0.0
    %675 = vmatpush1.msra.mxu0 %v210
    %676 = vmatprep.subr.mxu0 0.0
    %677 = vmatpush1.msra.mxu0 %v211
    %678 = vmatprep.subr.mxu0 0.0
    %679 = vmatpush1.msra.mxu0 %v212
    %680 = vmatprep.subr.mxu0 0.0
    %681 = vmatpush1.msra.mxu0 %v213
    %682 = vmatprep.subr.mxu0 0.0
    %683 = vmatpush1.msra.mxu0 %v214
    %684 = vmatprep.subr.mxu0 0.0
    %685 = vmatpush1.msra.mxu0 %v215
    %686 = vmatprep.subr.mxu0 0.0
    %687 = vmatpush1.msra.mxu0 %v216
    %688 = vmatprep.subr.mxu0 0.0
    %689 = vmatpush1.msra.mxu0 %v217
    %690 = vmatprep.subr.mxu0 0.0
    %691 = vmatpush1.msra.mxu0 %v218
    %692 = vmatprep.subr.mxu0 0.0
    %693 = vmatpush1.msra.mxu0 %v219
    %694 = vmatprep.subr.mxu0 0.0
    %695 = vmatpush1.msra.mxu0 %v220
    %696 = vmatprep.subr.mxu0 0.0
    %697 = vmatpush1.msra.mxu0 %v221
    %698 = vmatprep.subr.mxu0 0.0
    %699 = vmatpush1.msra.mxu0 %v222
    %700 = vmatprep.subr.mxu0 0.0
    %701 = vmatpush1.msra.mxu0 %v223
    %702 = vmatprep.subr.mxu0 0.0
    %703 = vmatpush1.msra.mxu0 0.0
    %704 = vmatprep.subr.mxu0 0.0
    %705 = vmatpush1.msra.mxu0 0.0
    %706 = vmatprep.subr.mxu0 0.0
    %707 = vmatpush1.msra.mxu0 0.0
    %708 = vmatprep.subr.mxu0 0.0
    %709 = vmatpush1.msra.mxu0 0.0
    %710 = vmatprep.subr.mxu0 0.0
    %711 = vmatpush1.msra.mxu0 0.0
    %712 = vmatprep.subr.mxu0 0.0
    %713 = vmatpush1.msra.mxu0 0.0
    %714 = vmatprep.subr.mxu0 0.0
    %715 = vmatpush1.msra.mxu0 0.0
    %716 = vmatprep.subr.mxu0 0.0
    %717 = vmatpush1.msra.mxu0 0.0
    %718 = vmatprep.subr.mxu0 0.0
    %719 = vmatpush1.msra.mxu0 0.0
    %720 = vmatprep.subr.mxu0 0.0
    %721 = vmatpush1.msra.mxu0 0.0
    %722 = vmatprep.subr.mxu0 0.0
    %723 = vmatpush1.msra.mxu0 0.0
    %724 = vmatprep.subr.mxu0 0.0
    %725 = vmatpush1.msra.mxu0 0.0
    %726 = vmatprep.subr.mxu0 0.0
    %727 = vmatpush1.msra.mxu0 0.0
    %728 = vmatprep.subr.mxu0 0.0
    %729 = vmatpush1.msra.mxu0 0.0
    %730 = vmatprep.subr.mxu0 0.0
    %731 = vmatpush1.msra.mxu0 0.0
    %732 = vmatprep.subr.mxu0 0.0
    %733 = vmatpush1.msra.mxu0 0.0
    %734 = vmatprep.mubr.f32.mxu0 0.0
    %735 = vmatmul.mubr.f32.gmra.mrb[0].mxu0 %v667
    %v736 = vpop.f32.mrb[0].mxu0
    %v737 = vadd.f32 0.0, %v736
    %v738 = vpop.f32.mrb[0].mxu0
    %739 = vdwg.mxu0
    %v740 = vadd.f32 %v669, %v737
    %v741 = vtanh.pop %v740
    %s742 = scalar_lea.vmem [#allocation2], 56
    %v743 = vld [vmem:[%s742] sm:$0xff]
    %744 = vmatprep.subr.mxu0 0.0
    %745 = vmatpush1.msra.mxu0 %v208
    %746 = vmatprep.subr.mxu0 0.0
    %747 = vmatpush1.msra.mxu0 %v209
    %748 = vmatprep.subr.mxu0 0.0
    %749 = vmatpush1.msra.mxu0 %v210
    %750 = vmatprep.subr.mxu0 0.0
    %751 = vmatpush1.msra.mxu0 %v211
    %752 = vmatprep.subr.mxu0 0.0
    %753 = vmatpush1.msra.mxu0 %v212
    %754 = vmatprep.subr.mxu0 0.0
    %755 = vmatpush1.msra.mxu0 %v213
    %756 = vmatprep.subr.mxu0 0.0
    %757 = vmatpush1.msra.mxu0 %v214
    %758 = vmatprep.subr.mxu0 0.0
    %759 = vmatpush1.msra.mxu0 %v215
    %760 = vmatprep.subr.mxu0 0.0
    %761 = vmatpush1.msra.mxu0 %v216
    %762 = vmatprep.subr.mxu0 0.0
    %763 = vmatpush1.msra.mxu0 %v217
    %764 = vmatprep.subr.mxu0 0.0
    %765 = vmatpush1.msra.mxu0 %v218
    %766 = vmatprep.subr.mxu0 0.0
    %767 = vmatpush1.msra.mxu0 %v219
    %768 = vmatprep.subr.mxu0 0.0
    %769 = vmatpush1.msra.mxu0 %v220
    %770 = vmatprep.subr.mxu0 0.0
    %771 = vmatpush1.msra.mxu0 %v221
    %772 = vmatprep.subr.mxu0 0.0
    %773 = vmatpush1.msra.mxu0 %v222
    %774 = vmatprep.subr.mxu0 0.0
    %775 = vmatpush1.msra.mxu0 %v223
    %776 = vmatprep.subr.mxu0 0.0
    %777 = vmatpush1.msra.mxu0 0.0
    %778 = vmatprep.subr.mxu0 0.0
    %779 = vmatpush1.msra.mxu0 0.0
    %780 = vmatprep.subr.mxu0 0.0
    %781 = vmatpush1.msra.mxu0 0.0
    %782 = vmatprep.subr.mxu0 0.0
    %783 = vmatpush1.msra.mxu0 0.0
    %784 = vmatprep.subr.mxu0 0.0
    %785 = vmatpush1.msra.mxu0 0.0
    %786 = vmatprep.subr.mxu0 0.0
    %787 = vmatpush1.msra.mxu0 0.0
    %788 = vmatprep.subr.mxu0 0.0
    %789 = vmatpush1.msra.mxu0 0.0
    %790 = vmatprep.subr.mxu0 0.0
    %791 = vmatpush1.msra.mxu0 0.0
    %792 = vmatprep.subr.mxu0 0.0
    %793 = vmatpush1.msra.mxu0 0.0
    %794 = vmatprep.subr.mxu0 0.0
    %795 = vmatpush1.msra.mxu0 0.0
    %796 = vmatprep.subr.mxu0 0.0
    %797 = vmatpush1.msra.mxu0 0.0
    %798 = vmatprep.subr.mxu0 0.0
    %799 = vmatpush1.msra.mxu0 0.0
    %800 = vmatprep.subr.mxu0 0.0
    %801 = vmatpush1.msra.mxu0 0.0
    %802 = vmatprep.subr.mxu0 0.0
    %803 = vmatpush1.msra.mxu0 0.0
    %804 = vmatprep.subr.mxu0 0.0
    %805 = vmatpush1.msra.mxu0 0.0
    %806 = vmatprep.subr.mxu0 0.0
    %807 = vmatpush1.msra.mxu0 0.0
    %808 = vmatprep.mubr.f32.mxu0 0.0
    %809 = vmatmul.mubr.f32.gmra.mrb[0].mxu0 %v741
    %v810 = vpop.f32.mrb[0].mxu0
    %v811 = vadd.f32 0.0, %v810
    %v812 = vpop.f32.mrb[0].mxu0
    %813 = vdwg.mxu0
    %v814 = vadd.f32 %v743, %v811
    %v815 = vtanh.pop %v814
    %816 = vst [vmem:[#allocation9] sm:$0xff] %v815
    // Predicated region
    $region34: #{tpu_custom_call.1} parent=1 // pred_check
      _
    $region35: #{tpu_custom_call.1} parent=1 // pred_check_branch
      %818 = sbr.rel (0) target = $region37
    $region36: #{tpu_custom_call.1} parent=1 // pred_region
      %s820 = ssub.s32 128, 128
      %821 = vsyncadd [#allocation5], %s820
      %s823 = sshll.u32 [#allocation9], 4
      %s824 = int_to_ptr.vmem [resolvable:$true] %s823
      %826 = dma.vmem_to_hbm [thread:$0]  %s824, 128, %s4, [#allocation5]
    $region37: #{tpu_custom_call.1} parent=1 // pred_fallthru
      _
    // Predicated region
    $region38: #{tpu_custom_call.1} parent=1 // pred_check
      _
    $region39: #{tpu_custom_call.1} parent=1 // pred_check_branch
      %828 = sbr.rel (0) target = $region41
    $region40: #{tpu_custom_call.1} parent=1 // pred_region
      %829 = dma.done [#allocation5], 128
    $region41: #{tpu_custom_call.1} parent=1 // pred_fallthru
      _
    %830 = vsyncpa [#allocation4], 1
    %831 = vsyncpa [#allocation7], 1
    %832 = vsyncpa [#allocation5], 1

</llo_original>
